<compile_context>
chip_gen: v5e
topology: v5e:2x2
jax: 0.10.0
libtpu: 0.0.40
codegen_flags: <defaults>
</compile_context>

<pallas_src>
import math

import jax
import jax.numpy as jnp
from jax.experimental import pallas as pl
from jax.experimental.pallas import tpu as pltpu  # noqa: F401


# ----------------------------------------------------------------------------
# Fused kernel: both 3-layer GCN branches in a single grid-less body.
# ----------------------------------------------------------------------------
def _dpp_gcn_kernel(x1_ref, adj1_ref, x2_ref, adj2_ref,
                    w1a_ref, w23a_ref, ba_ref,
                    w1b_ref, w23b_ref, bb_ref,
                    z1_ref, z2_ref, z3_ref, z4_ref, z5_ref, z6_ref):

    def branch(x_ref, adj_ref, w1_ref, w23_ref, b_ref, o1_ref, o2_ref, o3_ref):
        x = x_ref[...]          # (N, F)  f32
        adj = adj_ref[...]      # (N, N)  f32
        b = b_ref[...]          # (3, H)  f32

        def gconv(inp, w, bias):
            # support = inp @ W ; out = adj @ support + b   (MXU, f32 acc)
            support = jnp.dot(inp, w, preferred_element_type=jnp.float32)
            return jnp.dot(adj, support,
                           preferred_element_type=jnp.float32) + bias

        # layer 1: GraphConvolution + ReLU
        h1 = jnp.maximum(gconv(x, w1_ref[...], b[0]), 0.0)
        o1_ref[...] = h1

        # TODO(synk): F.dropout(p=dropout) between layers is stochastic
        # (training mode in the reference); implemented as identity
        # (eval-mode semantics).

        # layer 2: GraphConvolution
        h2 = gconv(h1, w23_ref[0], b[1])
        o2_ref[...] = h2

        # layer 3: GraphConvolution
        h3 = gconv(h2, w23_ref[1], b[2])
        o3_ref[...] = h3

    # Two independent branches in one body -> scheduler interleaves their
    # matmuls (no data dependence between them).
    branch(x1_ref, adj1_ref, w1a_ref, w23a_ref, ba_ref, z1_ref, z2_ref, z3_ref)
    branch(x2_ref, adj2_ref, w1b_ref, w23b_ref, bb_ref, z4_ref, z5_ref, z6_ref)


# ----------------------------------------------------------------------------
# DPP_GCN forward: exactly one pallas_call, no wrapper-side XLA ops.
# ----------------------------------------------------------------------------
def dpp_gcn_forward(params, x1, adj1, x2, adj2):
    g1, g2 = params["gcn1"], params["gcn2"]
    H = g1["w1"].shape[1]
    N1, F1 = x1.shape
    N2, F2 = x2.shape

    # Advisory cost hint (matmul flops only; epilogue is negligible).
    flops = 0
    for N, F in ((N1, F1), (N2, F2)):
        flops += 2 * N * F * H + 2 * N * N * H            # layer 1
        flops += 2 * (2 * N * H * H + 2 * N * N * H)      # layers 2 + 3
    bytes_accessed = 4 * (
        N1 * F1 + N1 * N1 + N2 * F2 + N2 * N2             # x, adj
        + (F1 * H + 2 * H * H + 3 * H)                    # branch-1 params
        + (F2 * H + 2 * H * H + 3 * H)                    # branch-2 params
        + 3 * (N1 + N2) * H)                              # outputs

    out_shape = (
        jax.ShapeDtypeStruct((N1, H), jnp.float32),
        jax.ShapeDtypeStruct((N1, H), jnp.float32),
        jax.ShapeDtypeStruct((N1, H), jnp.float32),
        jax.ShapeDtypeStruct((N2, H), jnp.float32),
        jax.ShapeDtypeStruct((N2, H), jnp.float32),
        jax.ShapeDtypeStruct((N2, H), jnp.float32),
    )

    # Grid-less launch: every operand is a single whole-array VMEM block.
    # TODO(synk): if N scales into the thousands, add row-blocking on N
    # (tile adj rows, keep weights/support resident) — adj alone is 4*N^2 B.
    return pl.pallas_call(
        _dpp_gcn_kernel,
        out_shape=out_shape,
        cost_estimate=pl.CostEstimate(
            flops=flops, transcendentals=0, bytes_accessed=bytes_accessed),
    )(x1, adj1, x2, adj2,
      g1["w1"], g1["w23"], g1["b"],
      g2["w1"], g2["w23"], g2["b"])


# ----------------------------------------------------------------------------
# Deterministic parameter construction (pygcn GraphConvolution init),
# stored pre-packed in the exact layout the kernel consumes.
# ----------------------------------------------------------------------------
def _gc_init(key, fan_in, fan_out):
    kw, kb = jax.random.split(key)
    stdv = 1.0 / math.sqrt(fan_out)
    w = jax.random.uniform(kw, (fan_in, fan_out), jnp.float32, -stdv, stdv)
    b = jax.random.uniform(kb, (fan_out,), jnp.float32, -stdv, stdv)
    return w, b


def init_gcn(key, nfeat, hidden=128):
    k1, k2, k3 = jax.random.split(key, 3)
    w1, b1 = _gc_init(k1, nfeat, hidden)
    w2, b2 = _gc_init(k2, hidden, hidden)
    w3, b3 = _gc_init(k3, hidden, hidden)
    # Pre-stack once at init: W2/W3 -> (2, H, H), biases -> (3, H).
    return {
        "w1": w1,
        "w23": jnp.stack([w2, w3]),
        "b": jnp.stack([b1, b2, b3]),
    }


def init_dpp_gcn(key, nfeat):
    k1, k2 = jax.random.split(key)
    return {"gcn1": init_gcn(k1, nfeat), "gcn2": init_gcn(k2, nfeat)}


# ----------------------------------------------------------------------------
# Main
# ----------------------------------------------------------------------------
if __name__ == "__main__":
    key = jax.random.PRNGKey(0)
    k_param, k_x1, k_x2, k_a1, k_a2 = jax.random.split(key, 5)

    N, F, H = 16, 64, 128   # nodes, nfeat, hidden (128 fixed by the spec)

    params = init_dpp_gcn(k_param, F)

    x1 = jax.random.normal(k_x1, (N, F), jnp.float32)
    x2 = jax.random.normal(k_x2, (N, F), jnp.float32)

    adj1 = (jax.random.uniform(k_a1, (N, N)) > 0.6).astype(jnp.float32)
    adj1 = jnp.maximum(adj1, adj1.T)
    adj2 = (jax.random.uniform(k_a2, (N, N)) > 0.6).astype(jnp.float32)
    adj2 = jnp.maximum(adj2, adj2.T)

    outs = dpp_gcn_forward(params, x1, adj1, x2, adj2)
    jax.block_until_ready(outs)

    assert len(outs) == 6
    for z in outs:
        assert z.shape == (N, H) and z.dtype == jnp.float32
        assert bool(jnp.all(jnp.isfinite(z)))
    # z1 / z4 come out of a ReLU
    assert bool(jnp.all(outs[0] >= 0.0)) and bool(jnp.all(outs[3] >= 0.0))

    print("KERNEL_OK")
</pallas_src>

<mosaic_0001>
module attributes {stable_mosaic.version = 11 : i64} {
  func.func @_dpp_gcn_kernel(%arg0: memref<16x64xf32, #tpu.memory_space<vmem>>, %arg1: memref<16x16xf32, #tpu.memory_space<vmem>>, %arg2: memref<16x64xf32, #tpu.memory_space<vmem>>, %arg3: memref<16x16xf32, #tpu.memory_space<vmem>>, %arg4: memref<64x128xf32, #tpu.memory_space<vmem>>, %arg5: memref<2x128x128xf32, #tpu.memory_space<vmem>>, %arg6: memref<3x128xf32, #tpu.memory_space<vmem>>, %arg7: memref<64x128xf32, #tpu.memory_space<vmem>>, %arg8: memref<2x128x128xf32, #tpu.memory_space<vmem>>, %arg9: memref<3x128xf32, #tpu.memory_space<vmem>>, %arg10: memref<16x128xf32, #tpu.memory_space<vmem>>, %arg11: memref<16x128xf32, #tpu.memory_space<vmem>>, %arg12: memref<16x128xf32, #tpu.memory_space<vmem>>, %arg13: memref<16x128xf32, #tpu.memory_space<vmem>>, %arg14: memref<16x128xf32, #tpu.memory_space<vmem>>, %arg15: memref<16x128xf32, #tpu.memory_space<vmem>>) attributes {dimension_semantics = [], scalar_prefetch = 0 : i64, scratch_operands = 0 : i64, tpu.core_type = #tpu.core_type<tc>} {
    %c0 = arith.constant 0 : index
    %c0_0 = arith.constant 0 : index
    %0 = vector.load %arg0[%c0, %c0_0] : memref<16x64xf32, #tpu.memory_space<vmem>>, vector<16x64xf32>
    %c0_1 = arith.constant 0 : index
    %c0_2 = arith.constant 0 : index
    %1 = vector.load %arg1[%c0_1, %c0_2] : memref<16x16xf32, #tpu.memory_space<vmem>>, vector<16x16xf32>
    %c0_3 = arith.constant 0 : index
    %c0_4 = arith.constant 0 : index
    %2 = vector.load %arg6[%c0_3, %c0_4] : memref<3x128xf32, #tpu.memory_space<vmem>>, vector<3x128xf32>
    %c0_5 = arith.constant 0 : index
    %c0_6 = arith.constant 0 : index
    %3 = vector.load %arg4[%c0_5, %c0_6] : memref<64x128xf32, #tpu.memory_space<vmem>>, vector<64x128xf32>
    %4 = vector.extract_strided_slice %2 {offsets = [0, 0], sizes = [1, 128], strides = [1, 1]} : vector<3x128xf32> to vector<1x128xf32>
    %5 = vector.shape_cast %4 : vector<1x128xf32> to vector<128xf32>
    %cst = arith.constant dense<0.000000e+00> : vector<16x128xf32>
    %6 = tpu.matmul %0, %3, %cst {dimension_numbers = #tpu.dot_dimension_numbers<[1], [0], [0], [1], [0, 0, 1, 1], [], []>} : vector<16x64xf32>, vector<64x128xf32>, vector<16x128xf32> -> vector<16x128xf32>
    %cst_7 = arith.constant dense<0.000000e+00> : vector<16x128xf32>
    %7 = tpu.matmul %1, %6, %cst_7 {dimension_numbers = #tpu.dot_dimension_numbers<[1], [0], [0], [1], [0, 0, 1, 1], [], []>} : vector<16x16xf32>, vector<16x128xf32>, vector<16x128xf32> -> vector<16x128xf32>
    %8 = vector.shape_cast %5 : vector<128xf32> to vector<1x128xf32>
    %9 = vector.broadcast %8 : vector<1x128xf32> to vector<16x128xf32>
    %10 = arith.addf %7, %9 : vector<16x128xf32>
    %cst_8 = arith.constant 0.000000e+00 : f32
    %11 = vector.broadcast %cst_8 : f32 to vector<16x128xf32>
    %12 = arith.maximumf %10, %11 : vector<16x128xf32>
    %c0_9 = arith.constant 0 : index
    %c0_10 = arith.constant 0 : index
    %13 = vector.load %arg10[%c0_9, %c0_10] : memref<16x128xf32, #tpu.memory_space<vmem>>, vector<16x128xf32>
    tpu.vector_store %arg10[%c0_9, %c0_10], %12 {strides = array<i32>} : memref<16x128xf32, #tpu.memory_space<vmem>>, vector<16x128xf32>,
    %c0_11 = arith.constant 0 : index
    %c0_12 = arith.constant 0 : index
    %c0_13 = arith.constant 0 : index
    %14 = vector.load %arg5[%c0_11, %c0_12, %c0_13] : memref<2x128x128xf32, #tpu.memory_space<vmem>>, vector<1x128x128xf32>
    %15 = vector.shape_cast %14 : vector<1x128x128xf32> to vector<128x128xf32>
    %16 = vector.extract_strided_slice %2 {offsets = [1, 0], sizes = [1, 128], strides = [1, 1]} : vector<3x128xf32> to vector<1x128xf32>
    %17 = vector.shape_cast %16 : vector<1x128xf32> to vector<128xf32>
    %cst_14 = arith.constant dense<0.000000e+00> : vector<16x128xf32>
    %18 = tpu.matmul %12, %15, %cst_14 {dimension_numbers = #tpu.dot_dimension_numbers<[1], [0], [0], [1], [0, 0, 1, 1], [], []>} : vector<16x128xf32>, vector<128x128xf32>, vector<16x128xf32> -> vector<16x128xf32>
    %cst_15 = arith.constant dense<0.000000e+00> : vector<16x128xf32>
    %19 = tpu.matmul %1, %18, %cst_15 {dimension_numbers = #tpu.dot_dimension_numbers<[1], [0], [0], [1], [0, 0, 1, 1], [], []>} : vector<16x16xf32>, vector<16x128xf32>, vector<16x128xf32> -> vector<16x128xf32>
    %20 = vector.shape_cast %17 : vector<128xf32> to vector<1x128xf32>
    %21 = vector.broadcast %20 : vector<1x128xf32> to vector<16x128xf32>
    %22 = arith.addf %19, %21 : vector<16x128xf32>
    %c0_16 = arith.constant 0 : index
    %c0_17 = arith.constant 0 : index
    %23 = vector.load %arg11[%c0_16, %c0_17] : memref<16x128xf32, #tpu.memory_space<vmem>>, vector<16x128xf32>
    tpu.vector_store %arg11[%c0_16, %c0_17], %22 {strides = array<i32>} : memref<16x128xf32, #tpu.memory_space<vmem>>, vector<16x128xf32>,
    %c1 = arith.constant 1 : index
    %c0_18 = arith.constant 0 : index
    %c0_19 = arith.constant 0 : index
    %24 = vector.load %arg5[%c1, %c0_18, %c0_19] : memref<2x128x128xf32, #tpu.memory_space<vmem>>, vector<1x128x128xf32>
    %25 = vector.shape_cast %24 : vector<1x128x128xf32> to vector<128x128xf32>
    %26 = vector.extract_strided_slice %2 {offsets = [2, 0], sizes = [1, 128], strides = [1, 1]} : vector<3x128xf32> to vector<1x128xf32>
    %27 = vector.shape_cast %26 : vector<1x128xf32> to vector<128xf32>
    %cst_20 = arith.constant dense<0.000000e+00> : vector<16x128xf32>
    %28 = tpu.matmul %22, %25, %cst_20 {dimension_numbers = #tpu.dot_dimension_numbers<[1], [0], [0], [1], [0, 0, 1, 1], [], []>} : vector<16x128xf32>, vector<128x128xf32>, vector<16x128xf32> -> vector<16x128xf32>
    %cst_21 = arith.constant dense<0.000000e+00> : vector<16x128xf32>
    %29 = tpu.matmul %1, %28, %cst_21 {dimension_numbers = #tpu.dot_dimension_numbers<[1], [0], [0], [1], [0, 0, 1, 1], [], []>} : vector<16x16xf32>, vector<16x128xf32>, vector<16x128xf32> -> vector<16x128xf32>
    %30 = vector.shape_cast %27 : vector<128xf32> to vector<1x128xf32>
    %31 = vector.broadcast %30 : vector<1x128xf32> to vector<16x128xf32>
    %32 = arith.addf %29, %31 : vector<16x128xf32>
    %c0_22 = arith.constant 0 : index
    %c0_23 = arith.constant 0 : index
    %33 = vector.load %arg12[%c0_22, %c0_23] : memref<16x128xf32, #tpu.memory_space<vmem>>, vector<16x128xf32>
    tpu.vector_store %arg12[%c0_22, %c0_23], %32 {strides = array<i32>} : memref<16x128xf32, #tpu.memory_space<vmem>>, vector<16x128xf32>,
    %c0_24 = arith.constant 0 : index
    %c0_25 = arith.constant 0 : index
    %34 = vector.load %arg2[%c0_24, %c0_25] : memref<16x64xf32, #tpu.memory_space<vmem>>, vector<16x64xf32>
    %c0_26 = arith.constant 0 : index
    %c0_27 = arith.constant 0 : index
    %35 = vector.load %arg3[%c0_26, %c0_27] : memref<16x16xf32, #tpu.memory_space<vmem>>, vector<16x16xf32>
    %c0_28 = arith.constant 0 : index
    %c0_29 = arith.constant 0 : index
    %36 = vector.load %arg9[%c0_28, %c0_29] : memref<3x128xf32, #tpu.memory_space<vmem>>, vector<3x128xf32>
    %c0_30 = arith.constant 0 : index
    %c0_31 = arith.constant 0 : index
    %37 = vector.load %arg7[%c0_30, %c0_31] : memref<64x128xf32, #tpu.memory_space<vmem>>, vector<64x128xf32>
    %38 = vector.extract_strided_slice %36 {offsets = [0, 0], sizes = [1, 128], strides = [1, 1]} : vector<3x128xf32> to vector<1x128xf32>
    %39 = vector.shape_cast %38 : vector<1x128xf32> to vector<128xf32>
    %cst_32 = arith.constant dense<0.000000e+00> : vector<16x128xf32>
    %40 = tpu.matmul %34, %37, %cst_32 {dimension_numbers = #tpu.dot_dimension_numbers<[1], [0], [0], [1], [0, 0, 1, 1], [], []>} : vector<16x64xf32>, vector<64x128xf32>, vector<16x128xf32> -> vector<16x128xf32>
    %cst_33 = arith.constant dense<0.000000e+00> : vector<16x128xf32>
    %41 = tpu.matmul %35, %40, %cst_33 {dimension_numbers = #tpu.dot_dimension_numbers<[1], [0], [0], [1], [0, 0, 1, 1], [], []>} : vector<16x16xf32>, vector<16x128xf32>, vector<16x128xf32> -> vector<16x128xf32>
    %42 = vector.shape_cast %39 : vector<128xf32> to vector<1x128xf32>
    %43 = vector.broadcast %42 : vector<1x128xf32> to vector<16x128xf32>
    %44 = arith.addf %41, %43 : vector<16x128xf32>
    %cst_34 = arith.constant 0.000000e+00 : f32
    %45 = vector.broadcast %cst_34 : f32 to vector<16x128xf32>
    %46 = arith.maximumf %44, %45 : vector<16x128xf32>
    %c0_35 = arith.constant 0 : index
    %c0_36 = arith.constant 0 : index
    %47 = vector.load %arg13[%c0_35, %c0_36] : memref<16x128xf32, #tpu.memory_space<vmem>>, vector<16x128xf32>
    tpu.vector_store %arg13[%c0_35, %c0_36], %46 {strides = array<i32>} : memref<16x128xf32, #tpu.memory_space<vmem>>, vector<16x128xf32>,
    %c0_37 = arith.constant 0 : index
    %c0_38 = arith.constant 0 : index
    %c0_39 = arith.constant 0 : index
    %48 = vector.load %arg8[%c0_37, %c0_38, %c0_39] : memref<2x128x128xf32, #tpu.memory_space<vmem>>, vector<1x128x128xf32>
    %49 = vector.shape_cast %48 : vector<1x128x128xf32> to vector<128x128xf32>
    %50 = vector.extract_strided_slice %36 {offsets = [1, 0], sizes = [1, 128], strides = [1, 1]} : vector<3x128xf32> to vector<1x128xf32>
    %51 = vector.shape_cast %50 : vector<1x128xf32> to vector<128xf32>
    %cst_40 = arith.constant dense<0.000000e+00> : vector<16x128xf32>
    %52 = tpu.matmul %46, %49, %cst_40 {dimension_numbers = #tpu.dot_dimension_numbers<[1], [0], [0], [1], [0, 0, 1, 1], [], []>} : vector<16x128xf32>, vector<128x128xf32>, vector<16x128xf32> -> vector<16x128xf32>
    %cst_41 = arith.constant dense<0.000000e+00> : vector<16x128xf32>
    %53 = tpu.matmul %35, %52, %cst_41 {dimension_numbers = #tpu.dot_dimension_numbers<[1], [0], [0], [1], [0, 0, 1, 1], [], []>} : vector<16x16xf32>, vector<16x128xf32>, vector<16x128xf32> -> vector<16x128xf32>
    %54 = vector.shape_cast %51 : vector<128xf32> to vector<1x128xf32>
    %55 = vector.broadcast %54 : vector<1x128xf32> to vector<16x128xf32>
    %56 = arith.addf %53, %55 : vector<16x128xf32>
    %c0_42 = arith.constant 0 : index
    %c0_43 = arith.constant 0 : index
    %57 = vector.load %arg14[%c0_42, %c0_43] : memref<16x128xf32, #tpu.memory_space<vmem>>, vector<16x128xf32>
    tpu.vector_store %arg14[%c0_42, %c0_43], %56 {strides = array<i32>} : memref<16x128xf32, #tpu.memory_space<vmem>>, vector<16x128xf32>,
    %c1_44 = arith.constant 1 : index
    %c0_45 = arith.constant 0 : index
    %c0_46 = arith.constant 0 : index
    %58 = vector.load %arg8[%c1_44, %c0_45, %c0_46] : memref<2x128x128xf32, #tpu.memory_space<vmem>>, vector<1x128x128xf32>
    %59 = vector.shape_cast %58 : vector<1x128x128xf32> to vector<128x128xf32>
    %60 = vector.extract_strided_slice %36 {offsets = [2, 0], sizes = [1, 128], strides = [1, 1]} : vector<3x128xf32> to vector<1x128xf32>
    %61 = vector.shape_cast %60 : vector<1x128xf32> to vector<128xf32>
    %cst_47 = arith.constant dense<0.000000e+00> : vector<16x128xf32>
    %62 = tpu.matmul %56, %59, %cst_47 {dimension_numbers = #tpu.dot_dimension_numbers<[1], [0], [0], [1], [0, 0, 1, 1], [], []>} : vector<16x128xf32>, vector<128x128xf32>, vector<16x128xf32> -> vector<16x128xf32>
    %cst_48 = arith.constant dense<0.000000e+00> : vector<16x128xf32>
    %63 = tpu.matmul %35, %62, %cst_48 {dimension_numbers = #tpu.dot_dimension_numbers<[1], [0], [0], [1], [0, 0, 1, 1], [], []>} : vector<16x16xf32>, vector<16x128xf32>, vector<16x128xf32> -> vector<16x128xf32>
    %64 = vector.shape_cast %61 : vector<128xf32> to vector<1x128xf32>
    %65 = vector.broadcast %64 : vector<1x128xf32> to vector<16x128xf32>
    %66 = arith.addf %63, %65 : vector<16x128xf32>
    %c0_49 = arith.constant 0 : index
    %c0_50 = arith.constant 0 : index
    %67 = vector.load %arg15[%c0_49, %c0_50] : memref<16x128xf32, #tpu.memory_space<vmem>>, vector<16x128xf32>
    tpu.vector_store %arg15[%c0_49, %c0_50], %66 {strides = array<i32>} : memref<16x128xf32, #tpu.memory_space<vmem>>, vector<16x128xf32>,
    return
  }
}

</mosaic_0001>

<llo_original>
// kernel: tpu_custom_call.1
$region0: #{tpu_custom_call.1}
  #allocation0 [shape = 'u32[]', space=smem, size = 0x4, offset = 0x4, fixed_abs, tag = 'smem constant byte address 0x4 - core index']
  #allocation1 [shape = 'u32[72,128]{1,0:T(1,128)}', space=vmem, size = 0x9000, scoped, tag = 'internal scratch']
  %s0 = inlined_call_operand.hbm [shape: f32[16,64], index: 0, kind: input, shape index: {}]
  %s1 = inlined_call_operand.hbm [shape: f32[16,16], index: 1, kind: input, shape index: {}]
  %s2 = inlined_call_operand.hbm [shape: f32[16,64], index: 2, kind: input, shape index: {}]
  %s3 = inlined_call_operand.hbm [shape: f32[16,16], index: 3, kind: input, shape index: {}]
  %s4 = inlined_call_operand.hbm [shape: f32[64,128], index: 4, kind: input, shape index: {}]
  %s5 = inlined_call_operand.hbm [shape: f32[2,128,128], index: 5, kind: input, shape index: {}]
  %s6 = inlined_call_operand.vmem [shape: f32[3,128], index: 6, kind: input, shape index: {}]
  %s7 = inlined_call_operand.hbm [shape: f32[64,128], index: 7, kind: input, shape index: {}]
  %s8 = inlined_call_operand.hbm [shape: f32[2,128,128], index: 8, kind: input, shape index: {}]
  %s9 = inlined_call_operand.vmem [shape: f32[3,128], index: 9, kind: input, shape index: {}]
  %s10 = inlined_call_operand.hbm [shape: f32[16,128], index: 10, kind: output, shape index: {0}]
  %s11 = inlined_call_operand.hbm [shape: f32[16,128], index: 11, kind: output, shape index: {1}]
  %s12 = inlined_call_operand.hbm [shape: f32[16,128], index: 12, kind: output, shape index: {2}]
  %s13 = inlined_call_operand.hbm [shape: f32[16,128], index: 13, kind: output, shape index: {3}]
  %s14 = inlined_call_operand.hbm [shape: f32[16,128], index: 14, kind: output, shape index: {4}]
  %s15 = inlined_call_operand.hbm [shape: f32[16,128], index: 15, kind: output, shape index: {5}]
  %16 = xla_tuple %s10, %s11, %s12, %s13, %s14, %s15
  %s17 = sld [smem:[#allocation0]]
  $region122: #{tpu_custom_call.1} parent=0
    _
  %s19 = ssub.s32 1, %s17
  %s20 = scalar_select 0, %s19, %s17
  $region1: #{tpu_custom_call.1} parent=0
    #allocation2 [shape = 'u8[8192]{0}', space=vmem, size = 0x2000, scoped, tag = 'input window, operand 0, single buffered']
    #allocation3 [shape = 's32[1]{0}', space=sflag, size = 0x4, scoped, tag = 'scoped memory for tpu_custom_call.1']
    #allocation4 [shape = 's32[1]{0}', space=sflag, size = 0x4, scoped, tag = 'scoped memory for tpu_custom_call.1']
    #allocation5 [shape = 'u8[8192]{0}', space=vmem, size = 0x2000, scoped, tag = 'input window, operand 1, single buffered']
    #allocation6 [shape = 's32[1]{0}', space=sflag, size = 0x4, scoped, tag = 'scoped memory for tpu_custom_call.1']
    #allocation7 [shape = 'u8[8192]{0}', space=vmem, size = 0x2000, scoped, tag = 'input window, operand 2, single buffered']
    #allocation8 [shape = 'u8[8192]{0}', space=vmem, size = 0x2000, scoped, tag = 'input window, operand 3, single buffered']
    #allocation9 [shape = 's32[1]{0}', space=sflag, size = 0x4, scoped, tag = 'scoped memory for tpu_custom_call.1']
    #allocation10 [shape = 'u8[32768]{0}', space=vmem, size = 0x8000, scoped, tag = 'input window, operand 4, single buffered']
    #allocation11 [shape = 'u8[131072]{0}', space=vmem, size = 0x20000, scoped, tag = 'input window, operand 5, single buffered']
    #allocation12 [shape = 's32[1]{0}', space=sflag, size = 0x4, scoped, tag = 'scoped memory for tpu_custom_call.1']
    #allocation13 [shape = 'u8[32768]{0}', space=vmem, size = 0x8000, scoped, tag = 'input window, operand 7, single buffered']
    #allocation14 [shape = 'u8[131072]{0}', space=vmem, size = 0x20000, scoped, tag = 'input window, operand 8, single buffered']
    #allocation15 [shape = 's32[1]{0}', space=sflag, size = 0x4, scoped, tag = 'scoped memory for tpu_custom_call.1']
    #allocation16 [shape = 'u8[8192]{0}', space=vmem, size = 0x2000, scoped, tag = 'output window, operand 0, single buffered']
    #allocation17 [shape = 'u8[8192]{0}', space=vmem, size = 0x2000, scoped, tag = 'output window, operand 1, single buffered']
    #allocation18 [shape = 's32[1]{0}', space=sflag, size = 0x4, scoped, tag = 'scoped memory for tpu_custom_call.1']
    #allocation19 [shape = 'u8[8192]{0}', space=vmem, size = 0x2000, scoped, tag = 'output window, operand 2, single buffered']
    #allocation20 [shape = 'u8[8192]{0}', space=vmem, size = 0x2000, scoped, tag = 'output window, operand 3, single buffered']
    #allocation21 [shape = 's32[1]{0}', space=sflag, size = 0x4, scoped, tag = 'scoped memory for tpu_custom_call.1']
    #allocation22 [shape = 'u8[8192]{0}', space=vmem, size = 0x2000, scoped, tag = 'output window, operand 4, single buffered']
    #allocation23 [shape = 'u8[8192]{0}', space=vmem, size = 0x2000, scoped, tag = 'output window, operand 5, single buffered']
    #allocation24 [shape = 's32[1]{0}', space=sflag, size = 0x4, scoped, tag = 'scoped memory for tpu_custom_call.1']
    %21 = vsyncpa [#allocation3], 0
    %22 = vsyncpa [#allocation6], 0
    %23 = vsyncpa [#allocation9], 0
    %24 = vsyncpa [#allocation12], 0
    %25 = vsyncpa [#allocation15], 0
    %26 = vsyncpa [#allocation4], 0
    %27 = vsyncpa [#allocation18], 0
    %28 = vsyncpa [#allocation21], 0
    %29 = vsyncpa [#allocation24], 0
    // Predicated region
    $region2: #{tpu_custom_call.1} parent=1 // pred_check
      _
    $region3: #{tpu_custom_call.1} parent=1 // pred_check_branch
      %31 = sbr.rel (0) target = $region5
    $region4: #{tpu_custom_call.1} parent=1 // pred_region
      %33 = vsyncadd [#allocation3], 0
      %s34 = sshll.u32 %s0, 4
      %s35 = int_to_ptr.hbm [resolvable:$true] %s34
      %s36 = sshll.u32 [#allocation2], 4
      %s37 = int_to_ptr.vmem [resolvable:$true] %s36
      %42 = dma.hbm_to_vmem [thread:$0]  %s35, 256, %s37, [#allocation3], 128, 128, 8
    $region5: #{tpu_custom_call.1} parent=1 // pred_fallthru
      _
    // Predicated region
    $region6: #{tpu_custom_call.1} parent=1 // pred_check
      _
    $region7: #{tpu_custom_call.1} parent=1 // pred_check_branch
      %44 = sbr.rel (0) target = $region9
    $region8: #{tpu_custom_call.1} parent=1 // pred_region
      %46 = vsyncadd [#allocation6], 0
      %s47 = sshll.u32 %s1, 4
      %s48 = int_to_ptr.hbm [resolvable:$true] %s47
      %s49 = sshll.u32 [#allocation5], 4
      %s50 = int_to_ptr.vmem [resolvable:$true] %s49
      %55 = dma.hbm_to_vmem [thread:$0]  %s48, 256, %s50, [#allocation6], 128, 128, 8
    $region9: #{tpu_custom_call.1} parent=1 // pred_fallthru
      _
    // Predicated region
    $region10: #{tpu_custom_call.1} parent=1 // pred_check
      _
    $region11: #{tpu_custom_call.1} parent=1 // pred_check_branch
      %57 = sbr.rel (0) target = $region13
    $region12: #{tpu_custom_call.1} parent=1 // pred_region
      %59 = vsyncadd [#allocation6], 0
      %s60 = sshll.u32 %s2, 4
      %s61 = int_to_ptr.hbm [resolvable:$true] %s60
      %s62 = sshll.u32 [#allocation7], 4
      %s63 = int_to_ptr.vmem [resolvable:$true] %s62
      %68 = dma.hbm_to_vmem [thread:$0]  %s61, 256, %s63, [#allocation6], 128, 128, 8
    $region13: #{tpu_custom_call.1} parent=1 // pred_fallthru
      _
    // Predicated region
    $region14: #{tpu_custom_call.1} parent=1 // pred_check
      _
    $region15: #{tpu_custom_call.1} parent=1 // pred_check_branch
      %70 = sbr.rel (0) target = $region17
    $region16: #{tpu_custom_call.1} parent=1 // pred_region
      %72 = vsyncadd [#allocation9], 0
      %s73 = sshll.u32 %s3, 4
      %s74 = int_to_ptr.hbm [resolvable:$true] %s73
      %s75 = sshll.u32 [#allocation8], 4
      %s76 = int_to_ptr.vmem [resolvable:$true] %s75
      %81 = dma.hbm_to_vmem [thread:$0]  %s74, 256, %s76, [#allocation9], 128, 128, 8
    $region17: #{tpu_custom_call.1} parent=1 // pred_fallthru
      _
    // Predicated region
    $region18: #{tpu_custom_call.1} parent=1 // pred_check
      _
    $region19: #{tpu_custom_call.1} parent=1 // pred_check_branch
      %83 = sbr.rel (0) target = $region21
    $region20: #{tpu_custom_call.1} parent=1 // pred_region
      %85 = vsyncadd [#allocation9], 0
      %s86 = sshll.u32 %s4, 4
      %s87 = int_to_ptr.hbm [resolvable:$true] %s86
      %s88 = sshll.u32 [#allocation10], 4
      %s89 = int_to_ptr.vmem [resolvable:$true] %s88
      %94 = dma.hbm_to_vmem [thread:$0]  %s87, 1024, %s89, [#allocation9], 128, 128, 8
    $region21: #{tpu_custom_call.1} parent=1 // pred_fallthru
      _
    // Predicated region
    $region22: #{tpu_custom_call.1} parent=1 // pred_check
      _
    $region23: #{tpu_custom_call.1} parent=1 // pred_check_branch
      %96 = sbr.rel (0) target = $region25
    $region24: #{tpu_custom_call.1} parent=1 // pred_region
      %98 = vsyncadd [#allocation12], 0
      %s99 = sshll.u32 %s5, 4
      %s100 = int_to_ptr.hbm [resolvable:$true] %s99
      %s101 = sshll.u32 [#allocation11], 4
      %s102 = int_to_ptr.vmem [resolvable:$true] %s101
      %107 = dma.hbm_to_vmem [thread:$0]  %s100, 4096, %s102, [#allocation12], 128, 128, 8
    $region25: #{tpu_custom_call.1} parent=1 // pred_fallthru
      _
    // Predicated region
    $region26: #{tpu_custom_call.1} parent=1 // pred_check
      _
    $region27: #{tpu_custom_call.1} parent=1 // pred_check_branch
      %109 = sbr.rel (0) target = $region29
    $region28: #{tpu_custom_call.1} parent=1 // pred_region
      _
    $region29: #{tpu_custom_call.1} parent=1 // pred_fallthru
      _
    // Predicated region
    $region30: #{tpu_custom_call.1} parent=1 // pred_check
      _
    $region31: #{tpu_custom_call.1} parent=1 // pred_check_branch
      %111 = sbr.rel (0) target = $region33
    $region32: #{tpu_custom_call.1} parent=1 // pred_region
      %113 = vsyncadd [#allocation12], 0
      %s114 = sshll.u32 %s7, 4
      %s115 = int_to_ptr.hbm [resolvable:$true] %s114
      %s116 = sshll.u32 [#allocation13], 4
      %s117 = int_to_ptr.vmem [resolvable:$true] %s116
      %122 = dma.hbm_to_vmem [thread:$0]  %s115, 1024, %s117, [#allocation12], 128, 128, 8
    $region33: #{tpu_custom_call.1} parent=1 // pred_fallthru
      _
    // Predicated region
    $region34: #{tpu_custom_call.1} parent=1 // pred_check
      _
    $region35: #{tpu_custom_call.1} parent=1 // pred_check_branch
      %124 = sbr.rel (0) target = $region37
    $region36: #{tpu_custom_call.1} parent=1 // pred_region
      %126 = vsyncadd [#allocation15], 0
      %s127 = sshll.u32 %s8, 4
      %s128 = int_to_ptr.hbm [resolvable:$true] %s127
      %s129 = sshll.u32 [#allocation14], 4
      %s130 = int_to_ptr.vmem [resolvable:$true] %s129
      %135 = dma.hbm_to_vmem [thread:$0]  %s128, 4096, %s130, [#allocation15], 128, 128, 8
    $region37: #{tpu_custom_call.1} parent=1 // pred_fallthru
      _
    // Predicated region
    $region38: #{tpu_custom_call.1} parent=1 // pred_check
      _
    $region39: #{tpu_custom_call.1} parent=1 // pred_check_branch
      %137 = sbr.rel (0) target = $region41
    $region40: #{tpu_custom_call.1} parent=1 // pred_region
      _
    $region41: #{tpu_custom_call.1} parent=1 // pred_fallthru
      _
    // Predicated region
    $region42: #{tpu_custom_call.1} parent=1 // pred_check
      _
    $region43: #{tpu_custom_call.1} parent=1 // pred_check_branch
      %139 = sbr.rel (0) target = $region45
    $region44: #{tpu_custom_call.1} parent=1 // pred_region
      %141 = dma.done [#allocation3], 256
    $region45: #{tpu_custom_call.1} parent=1 // pred_fallthru
      _
    // Predicated region
    $region46: #{tpu_custom_call.1} parent=1 // pred_check
      _
    $region47: #{tpu_custom_call.1} parent=1 // pred_check_branch
      %143 = sbr.rel (0) target = $region49
    $region48: #{tpu_custom_call.1} parent=1 // pred_region
      %145 = dma.done [#allocation6], 256
    $region49: #{tpu_custom_call.1} parent=1 // pred_fallthru
      _
    // Predicated region
    $region50: #{tpu_custom_call.1} parent=1 // pred_check
      _
    $region51: #{tpu_custom_call.1} parent=1 // pred_check_branch
      %147 = sbr.rel (0) target = $region53
    $region52: #{tpu_custom_call.1} parent=1 // pred_region
      %149 = dma.done [#allocation6], 256
    $region53: #{tpu_custom_call.1} parent=1 // pred_fallthru
      _
    // Predicated region
    $region54: #{tpu_custom_call.1} parent=1 // pred_check
      _
    $region55: #{tpu_custom_call.1} parent=1 // pred_check_branch
      %151 = sbr.rel (0) target = $region57
    $region56: #{tpu_custom_call.1} parent=1 // pred_region
      %153 = dma.done [#allocation9], 256
    $region57: #{tpu_custom_call.1} parent=1 // pred_fallthru
      _
    // Predicated region
    $region58: #{tpu_custom_call.1} parent=1 // pred_check
      _
    $region59: #{tpu_custom_call.1} parent=1 // pred_check_branch
      %155 = sbr.rel (0) target = $region61
    $region60: #{tpu_custom_call.1} parent=1 // pred_region
      %157 = dma.done [#allocation9], 1024
    $region61: #{tpu_custom_call.1} parent=1 // pred_fallthru
      _
    // Predicated region
    $region62: #{tpu_custom_call.1} parent=1 // pred_check
      _
    $region63: #{tpu_custom_call.1} parent=1 // pred_check_branch
      %159 = sbr.rel (0) target = $region65
    $region64: #{tpu_custom_call.1} parent=1 // pred_region
      %161 = dma.done [#allocation12], 4096
    $region65: #{tpu_custom_call.1} parent=1 // pred_fallthru
      _
    // Predicated region
    $region66: #{tpu_custom_call.1} parent=1 // pred_check
      _
    $region67: #{tpu_custom_call.1} parent=1 // pred_check_branch
      %163 = sbr.rel (0) target = $region69
    $region68: #{tpu_custom_call.1} parent=1 // pred_region
      %165 = dma.done [#allocation12], 1024
    $region69: #{tpu_custom_call.1} parent=1 // pred_fallthru
      _
    // Predicated region
    $region70: #{tpu_custom_call.1} parent=1 // pred_check
      _
    $region71: #{tpu_custom_call.1} parent=1 // pred_check_branch
      %167 = sbr.rel (0) target = $region73
    $region72: #{tpu_custom_call.1} parent=1 // pred_region
      %169 = dma.done [#allocation15], 4096
    $region73: #{tpu_custom_call.1} parent=1 // pred_fallthru
      _
    %v170 = vld [vmem:[#allocation2] sm:$0xff]
    %v171 = vld [vmem:[#allocation2 + $0x8] sm:$0xff]
    %v172 = vld [vmem:[#allocation5] sm:$0xff]
    %v173 = vld [vmem:[#allocation5 + $0x8] sm:$0xff]
    %v174 = vld [vmem:[%s6] sm:$0x7]
    %v175 = vld [vmem:[#allocation10] sm:$0xff]
    %v176 = vld [vmem:[#allocation10 + $0x8] sm:$0xff]
    %v177 = vld [vmem:[#allocation10 + $0x10] sm:$0xff]
    %v178 = vld [vmem:[#allocation10 + $0x18] sm:$0xff]
    %v179 = vld [vmem:[#allocation10 + $0x20] sm:$0xff]
    %v180 = vld [vmem:[#allocation10 + $0x28] sm:$0xff]
    %v181 = vld [vmem:[#allocation10 + $0x30] sm:$0xff]
    %v182 = vld [vmem:[#allocation10 + $0x38] sm:$0xff]
    %vm183 = vcmask 523264
    %v185 = vsel %vm183, %v170, 0
    %v188 = vsel %vm183, %v171, 0
    %190 = vmatpush.msra.mxu0 0.0
    %191 = vmatpush.msra.mxu0 0.0
    %192 = vmatpush.msra.mxu0 0.0
    %193 = vmatpush.msra.mxu0 0.0
    %194 = vmatpush.msra.mxu0 0.0
    %195 = vmatpush.msra.mxu0 0.0
    %196 = vmatpush.msra.mxu0 0.0
    %197 = vmatpush.msra.mxu0 0.0
    %198 = vmatpush.msra.mxu0 %v182
    %199 = vmatpush.msra.mxu0 %v181
    %200 = vmatpush.msra.mxu0 %v180
    %201 = vmatpush.msra.mxu0 %v179
    %202 = vmatpush.msra.mxu0 %v178
    %203 = vmatpush.msra.mxu0 %v177
    %204 = vmatpush.msra.mxu0 %v176
    %205 = vmatpush.msra.mxu0 %v175
    %206 = vmatmul.f32.gmra.mxu0 %v185
    %v207 = vpop.f32.mrf.mxu0
    %v208 = vadd.f32 0.0, %v207
    %209 = vmatmul.f32.gmra.mxu0 %v188
    %v210 = vpop.f32.mrf.mxu0
    %v211 = vadd.f32 0.0, %v210
    %212 = vdwg.mxu0
    %v213 = vperm.slane %v174, 0
    %vm214 = vcmask 130048
    %v216 = vsel %vm214, %v172, 0
    %v219 = vsel %vm214, %v173, 0
    %221 = vmatpush.msra.mxu0 0.0
    %222 = vmatpush.msra.mxu0 0.0
    %223 = vmatpush.msra.mxu0 0.0
    %224 = vmatpush.msra.mxu0 0.0
    %225 = vmatpush.msra.mxu0 0.0
    %226 = vmatpush.msra.mxu0 0.0
    %227 = vmatpush.msra.mxu0 0.0
    %228 = vmatpush.msra.mxu0 0.0
    %229 = vmatpush.msra.mxu0 0.0
    %230 = vmatpush.msra.mxu0 0.0
    %231 = vmatpush.msra.mxu0 0.0
    %232 = vmatpush.msra.mxu0 0.0
    %233 = vmatpush.msra.mxu0 0.0
    %234 = vmatpush.msra.mxu0 0.0
    %235 = vmatpush.msra.mxu0 %v211
    %236 = vmatpush.msra.mxu0 %v208
    %237 = vmatmul.f32.gmra.mxu0 %v216
    %v238 = vpop.f32.mrf.mxu0
    %v239 = vadd.f32 %v213, %v238
    %240 = vmatmul.f32.gmra.mxu0 %v219
    %v241 = vpop.f32.mrf.mxu0
    %v242 = vadd.f32 %v213, %v241
    %243 = vdwg.mxu0
    %v244 = vmax.f32 %v239, 0.0
    %v245 = vmax.f32 %v242, 0.0
    %246 = vst [vmem:[#allocation16] sm:$0xff] %v244
    %247 = vst [vmem:[#allocation16 + $0x8] sm:$0xff] %v245
    %v248 = vld [vmem:[#allocation11] sm:$0xff]
    %v249 = vld [vmem:[#allocation11 + $0x8] sm:$0xff]
    %v250 = vld [vmem:[#allocation11 + $0x10] sm:$0xff]
    %v251 = vld [vmem:[#allocation11 + $0x18] sm:$0xff]
    %v252 = vld [vmem:[#allocation11 + $0x20] sm:$0xff]
    %v253 = vld [vmem:[#allocation11 + $0x28] sm:$0xff]
    %v254 = vld [vmem:[#allocation11 + $0x30] sm:$0xff]
    %v255 = vld [vmem:[#allocation11 + $0x38] sm:$0xff]
    %v256 = vld [vmem:[#allocation11 + $0x40] sm:$0xff]
    %v257 = vld [vmem:[#allocation11 + $0x48] sm:$0xff]
    %v258 = vld [vmem:[#allocation11 + $0x50] sm:$0xff]
    %v259 = vld [vmem:[#allocation11 + $0x58] sm:$0xff]
    %v260 = vld [vmem:[#allocation11 + $0x60] sm:$0xff]
    %v261 = vld [vmem:[#allocation11 + $0x68] sm:$0xff]
    %v262 = vld [vmem:[#allocation11 + $0x70] sm:$0xff]
    %v263 = vld [vmem:[#allocation11 + $0x78] sm:$0xff]
    %264 = vmatpush.msra.mxu0 %v263
    %265 = vmatpush.msra.mxu0 %v262
    %266 = vmatpush.msra.mxu0 %v261
    %267 = vmatpush.msra.mxu0 %v260
    %268 = vmatpush.msra.mxu0 %v259
    %269 = vmatpush.msra.mxu0 %v258
    %270 = vmatpush.msra.mxu0 %v257
    %271 = vmatpush.msra.mxu0 %v256
    %272 = vmatpush.msra.mxu0 %v255
    %273 = vmatpush.msra.mxu0 %v254
    %274 = vmatpush.msra.mxu0 %v253
    %275 = vmatpush.msra.mxu0 %v252
    %276 = vmatpush.msra.mxu0 %v251
    %277 = vmatpush.msra.mxu0 %v250
    %278 = vmatpush.msra.mxu0 %v249
    %279 = vmatpush.msra.mxu0 %v248
    %280 = vmatmul.f32.gmra.mxu0 %v244
    %v281 = vpop.f32.mrf.mxu0
    %v282 = vadd.f32 0.0, %v281
    %283 = vmatmul.f32.gmra.mxu0 %v245
    %v284 = vpop.f32.mrf.mxu0
    %v285 = vadd.f32 0.0, %v284
    %286 = vdwg.mxu0
    %v287 = vperm.slane %v174, 1
    %288 = vmatpush.msra.mxu0 0.0
    %289 = vmatpush.msra.mxu0 0.0
    %290 = vmatpush.msra.mxu0 0.0
    %291 = vmatpush.msra.mxu0 0.0
    %292 = vmatpush.msra.mxu0 0.0
    %293 = vmatpush.msra.mxu0 0.0
    %294 = vmatpush.msra.mxu0 0.0
    %295 = vmatpush.msra.mxu0 0.0
    %296 = vmatpush.msra.mxu0 0.0
    %297 = vmatpush.msra.mxu0 0.0
    %298 = vmatpush.msra.mxu0 0.0
    %299 = vmatpush.msra.mxu0 0.0
    %300 = vmatpush.msra.mxu0 0.0
    %301 = vmatpush.msra.mxu0 0.0
    %302 = vmatpush.msra.mxu0 %v285
    %303 = vmatpush.msra.mxu0 %v282
    %304 = vmatmul.f32.gmra.mxu0 %v216
    %v305 = vpop.f32.mrf.mxu0
    %v306 = vadd.f32 %v287, %v305
    %307 = vmatmul.f32.gmra.mxu0 %v219
    %v308 = vpop.f32.mrf.mxu0
    %v309 = vadd.f32 %v287, %v308
    %310 = vdwg.mxu0
    %311 = vst [vmem:[#allocation17] sm:$0xff] %v306
    %312 = vst [vmem:[#allocation17 + $0x8] sm:$0xff] %v309
    %s313 = scalar_lea.vmem [#allocation11], 128
    %v314 = vld [vmem:[%s313] sm:$0xff]
    %v315 = vld [vmem:[%s313 + $0x8] sm:$0xff]
    %v316 = vld [vmem:[%s313 + $0x10] sm:$0xff]
    %v317 = vld [vmem:[%s313 + $0x18] sm:$0xff]
    %v318 = vld [vmem:[%s313 + $0x20] sm:$0xff]
    %v319 = vld [vmem:[%s313 + $0x28] sm:$0xff]
    %v320 = vld [vmem:[%s313 + $0x30] sm:$0xff]
    %v321 = vld [vmem:[%s313 + $0x38] sm:$0xff]
    %v322 = vld [vmem:[%s313 + $0x40] sm:$0xff]
    %v323 = vld [vmem:[%s313 + $0x48] sm:$0xff]
    %v324 = vld [vmem:[%s313 + $0x50] sm:$0xff]
    %v325 = vld [vmem:[%s313 + $0x58] sm:$0xff]
    %v326 = vld [vmem:[%s313 + $0x60] sm:$0xff]
    %v327 = vld [vmem:[%s313 + $0x68] sm:$0xff]
    %v328 = vld [vmem:[%s313 + $0x70] sm:$0xff]
    %v329 = vld [vmem:[%s313 + $0x78] sm:$0xff]
    %330 = vmatpush.msra.mxu0 %v329
    %331 = vmatpush.msra.mxu0 %v328
    %332 = vmatpush.msra.mxu0 %v327
    %333 = vmatpush.msra.mxu0 %v326
    %334 = vmatpush.msra.mxu0 %v325
    %335 = vmatpush.msra.mxu0 %v324
    %336 = vmatpush.msra.mxu0 %v323
    %337 = vmatpush.msra.mxu0 %v322
    %338 = vmatpush.msra.mxu0 %v321
    %339 = vmatpush.msra.mxu0 %v320
    %340 = vmatpush.msra.mxu0 %v319
    %341 = vmatpush.msra.mxu0 %v318
    %342 = vmatpush.msra.mxu0 %v317
    %343 = vmatpush.msra.mxu0 %v316
    %344 = vmatpush.msra.mxu0 %v315
    %345 = vmatpush.msra.mxu0 %v314
    %346 = vmatmul.f32.gmra.mxu0 %v306
    %v347 = vpop.f32.mrf.mxu0
    %v348 = vadd.f32 0.0, %v347
    %349 = vmatmul.f32.gmra.mxu0 %v309
    %v350 = vpop.f32.mrf.mxu0
    %v351 = vadd.f32 0.0, %v350
    %352 = vdwg.mxu0
    %v353 = vperm.slane %v174, 2
    %354 = vmatpush.msra.mxu0 0.0
    %355 = vmatpush.msra.mxu0 0.0
    %356 = vmatpush.msra.mxu0 0.0
    %357 = vmatpush.msra.mxu0 0.0
    %358 = vmatpush.msra.mxu0 0.0
    %359 = vmatpush.msra.mxu0 0.0
    %360 = vmatpush.msra.mxu0 0.0
    %361 = vmatpush.msra.mxu0 0.0
    %362 = vmatpush.msra.mxu0 0.0
    %363 = vmatpush.msra.mxu0 0.0
    %364 = vmatpush.msra.mxu0 0.0
    %365 = vmatpush.msra.mxu0 0.0
    %366 = vmatpush.msra.mxu0 0.0
    %367 = vmatpush.msra.mxu0 0.0
    %368 = vmatpush.msra.mxu0 %v351
    %369 = vmatpush.msra.mxu0 %v348
    %370 = vmatmul.f32.gmra.mxu0 %v216
    %v371 = vpop.f32.mrf.mxu0
    %v372 = vadd.f32 %v353, %v371
    %373 = vmatmul.f32.gmra.mxu0 %v219
    %v374 = vpop.f32.mrf.mxu0
    %v375 = vadd.f32 %v353, %v374
    %376 = vdwg.mxu0
    %377 = vst [vmem:[#allocation19] sm:$0xff] %v372
    %378 = vst [vmem:[#allocation19 + $0x8] sm:$0xff] %v375
    %v379 = vld [vmem:[#allocation7] sm:$0xff]
    %v380 = vld [vmem:[#allocation7 + $0x8] sm:$0xff]
    %v381 = vld [vmem:[#allocation8] sm:$0xff]
    %v382 = vld [vmem:[#allocation8 + $0x8] sm:$0xff]
    %v383 = vld [vmem:[%s9] sm:$0x7]
    %v384 = vld [vmem:[#allocation13] sm:$0xff]
    %v385 = vld [vmem:[#allocation13 + $0x8] sm:$0xff]
    %v386 = vld [vmem:[#allocation13 + $0x10] sm:$0xff]
    %v387 = vld [vmem:[#allocation13 + $0x18] sm:$0xff]
    %v388 = vld [vmem:[#allocation13 + $0x20] sm:$0xff]
    %v389 = vld [vmem:[#allocation13 + $0x28] sm:$0xff]
    %v390 = vld [vmem:[#allocation13 + $0x30] sm:$0xff]
    %v391 = vld [vmem:[#allocation13 + $0x38] sm:$0xff]
    %v393 = vsel %vm183, %v379, 0
    %v396 = vsel %vm183, %v380, 0
    %398 = vmatpush.msra.mxu0 0.0
    %399 = vmatpush.msra.mxu0 0.0
    %400 = vmatpush.msra.mxu0 0.0
    %401 = vmatpush.msra.mxu0 0.0
    %402 = vmatpush.msra.mxu0 0.0
    %403 = vmatpush.msra.mxu0 0.0
    %404 = vmatpush.msra.mxu0 0.0
    %405 = vmatpush.msra.mxu0 0.0
    %406 = vmatpush.msra.mxu0 %v391
    %407 = vmatpush.msra.mxu0 %v390
    %408 = vmatpush.msra.mxu0 %v389
    %409 = vmatpush.msra.mxu0 %v388
    %410 = vmatpush.msra.mxu0 %v387
    %411 = vmatpush.msra.mxu0 %v386
    %412 = vmatpush.msra.mxu0 %v385
    %413 = vmatpush.msra.mxu0 %v384
    %414 = vmatmul.f32.gmra.mxu0 %v393
    %v415 = vpop.f32.mrf.mxu0
    %v416 = vadd.f32 0.0, %v415
    %417 = vmatmul.f32.gmra.mxu0 %v396
    %v418 = vpop.f32.mrf.mxu0
    %v419 = vadd.f32 0.0, %v418
    %420 = vdwg.mxu0
    %v421 = vperm.slane %v383, 0
    %v423 = vsel %vm214, %v381, 0
    %v426 = vsel %vm214, %v382, 0
    %428 = vmatpush.msra.mxu0 0.0
    %429 = vmatpush.msra.mxu0 0.0
    %430 = vmatpush.msra.mxu0 0.0
    %431 = vmatpush.msra.mxu0 0.0
    %432 = vmatpush.msra.mxu0 0.0
    %433 = vmatpush.msra.mxu0 0.0
    %434 = vmatpush.msra.mxu0 0.0
    %435 = vmatpush.msra.mxu0 0.0
    %436 = vmatpush.msra.mxu0 0.0
    %437 = vmatpush.msra.mxu0 0.0
    %438 = vmatpush.msra.mxu0 0.0
    %439 = vmatpush.msra.mxu0 0.0
    %440 = vmatpush.msra.mxu0 0.0
    %441 = vmatpush.msra.mxu0 0.0
    %442 = vmatpush.msra.mxu0 %v419
    %443 = vmatpush.msra.mxu0 %v416
    %444 = vmatmul.f32.gmra.mxu0 %v423
    %v445 = vpop.f32.mrf.mxu0
    %v446 = vadd.f32 %v421, %v445
    %447 = vmatmul.f32.gmra.mxu0 %v426
    %v448 = vpop.f32.mrf.mxu0
    %v449 = vadd.f32 %v421, %v448
    %450 = vdwg.mxu0
    %v451 = vmax.f32 %v446, 0.0
    %v452 = vmax.f32 %v449, 0.0
    %453 = vst [vmem:[#allocation20] sm:$0xff] %v451
    %454 = vst [vmem:[#allocation20 + $0x8] sm:$0xff] %v452
    %v455 = vld [vmem:[#allocation14] sm:$0xff]
    %v456 = vld [vmem:[#allocation14 + $0x8] sm:$0xff]
    %v457 = vld [vmem:[#allocation14 + $0x10] sm:$0xff]
    %v458 = vld [vmem:[#allocation14 + $0x18] sm:$0xff]
    %v459 = vld [vmem:[#allocation14 + $0x20] sm:$0xff]
    %v460 = vld [vmem:[#allocation14 + $0x28] sm:$0xff]
    %v461 = vld [vmem:[#allocation14 + $0x30] sm:$0xff]
    %v462 = vld [vmem:[#allocation14 + $0x38] sm:$0xff]
    %v463 = vld [vmem:[#allocation14 + $0x40] sm:$0xff]
    %v464 = vld [vmem:[#allocation14 + $0x48] sm:$0xff]
    %v465 = vld [vmem:[#allocation14 + $0x50] sm:$0xff]
    %v466 = vld [vmem:[#allocation14 + $0x58] sm:$0xff]
    %v467 = vld [vmem:[#allocation14 + $0x60] sm:$0xff]
    %v468 = vld [vmem:[#allocation14 + $0x68] sm:$0xff]
    %v469 = vld [vmem:[#allocation14 + $0x70] sm:$0xff]
    %v470 = vld [vmem:[#allocation14 + $0x78] sm:$0xff]
    %471 = vmatpush.msra.mxu0 %v470
    %472 = vmatpush.msra.mxu0 %v469
    %473 = vmatpush.msra.mxu0 %v468
    %474 = vmatpush.msra.mxu0 %v467
    %475 = vmatpush.msra.mxu0 %v466
    %476 = vmatpush.msra.mxu0 %v465
    %477 = vmatpush.msra.mxu0 %v464
    %478 = vmatpush.msra.mxu0 %v463
    %479 = vmatpush.msra.mxu0 %v462
    %480 = vmatpush.msra.mxu0 %v461
    %481 = vmatpush.msra.mxu0 %v460
    %482 = vmatpush.msra.mxu0 %v459
    %483 = vmatpush.msra.mxu0 %v458
    %484 = vmatpush.msra.mxu0 %v457
    %485 = vmatpush.msra.mxu0 %v456
    %486 = vmatpush.msra.mxu0 %v455
    %487 = vmatmul.f32.gmra.mxu0 %v451
    %v488 = vpop.f32.mrf.mxu0
    %v489 = vadd.f32 0.0, %v488
    %490 = vmatmul.f32.gmra.mxu0 %v452
    %v491 = vpop.f32.mrf.mxu0
    %v492 = vadd.f32 0.0, %v491
    %493 = vdwg.mxu0
    %v494 = vperm.slane %v383, 1
    %495 = vmatpush.msra.mxu0 0.0
    %496 = vmatpush.msra.mxu0 0.0
    %497 = vmatpush.msra.mxu0 0.0
    %498 = vmatpush.msra.mxu0 0.0
    %499 = vmatpush.msra.mxu0 0.0
    %500 = vmatpush.msra.mxu0 0.0
    %501 = vmatpush.msra.mxu0 0.0
    %502 = vmatpush.msra.mxu0 0.0
    %503 = vmatpush.msra.mxu0 0.0
    %504 = vmatpush.msra.mxu0 0.0
    %505 = vmatpush.msra.mxu0 0.0
    %506 = vmatpush.msra.mxu0 0.0
    %507 = vmatpush.msra.mxu0 0.0
    %508 = vmatpush.msra.mxu0 0.0
    %509 = vmatpush.msra.mxu0 %v492
    %510 = vmatpush.msra.mxu0 %v489
    %511 = vmatmul.f32.gmra.mxu0 %v423
    %v512 = vpop.f32.mrf.mxu0
    %v513 = vadd.f32 %v494, %v512
    %514 = vmatmul.f32.gmra.mxu0 %v426
    %v515 = vpop.f32.mrf.mxu0
    %v516 = vadd.f32 %v494, %v515
    %517 = vdwg.mxu0
    %518 = vst [vmem:[#allocation22] sm:$0xff] %v513
    %519 = vst [vmem:[#allocation22 + $0x8] sm:$0xff] %v516
    %s520 = scalar_lea.vmem [#allocation14], 128
    %v521 = vld [vmem:[%s520] sm:$0xff]
    %v522 = vld [vmem:[%s520 + $0x8] sm:$0xff]
    %v523 = vld [vmem:[%s520 + $0x10] sm:$0xff]
    %v524 = vld [vmem:[%s520 + $0x18] sm:$0xff]
    %v525 = vld [vmem:[%s520 + $0x20] sm:$0xff]
    %v526 = vld [vmem:[%s520 + $0x28] sm:$0xff]
    %v527 = vld [vmem:[%s520 + $0x30] sm:$0xff]
    %v528 = vld [vmem:[%s520 + $0x38] sm:$0xff]
    %v529 = vld [vmem:[%s520 + $0x40] sm:$0xff]
    %v530 = vld [vmem:[%s520 + $0x48] sm:$0xff]
    %v531 = vld [vmem:[%s520 + $0x50] sm:$0xff]
    %v532 = vld [vmem:[%s520 + $0x58] sm:$0xff]
    %v533 = vld [vmem:[%s520 + $0x60] sm:$0xff]
    %v534 = vld [vmem:[%s520 + $0x68] sm:$0xff]
    %v535 = vld [vmem:[%s520 + $0x70] sm:$0xff]
    %v536 = vld [vmem:[%s520 + $0x78] sm:$0xff]
    %537 = vmatpush.msra.mxu0 %v536
    %538 = vmatpush.msra.mxu0 %v535
    %539 = vmatpush.msra.mxu0 %v534
    %540 = vmatpush.msra.mxu0 %v533
    %541 = vmatpush.msra.mxu0 %v532
    %542 = vmatpush.msra.mxu0 %v531
    %543 = vmatpush.msra.mxu0 %v530
    %544 = vmatpush.msra.mxu0 %v529
    %545 = vmatpush.msra.mxu0 %v528
    %546 = vmatpush.msra.mxu0 %v527
    %547 = vmatpush.msra.mxu0 %v526
    %548 = vmatpush.msra.mxu0 %v525
    %549 = vmatpush.msra.mxu0 %v524
    %550 = vmatpush.msra.mxu0 %v523
    %551 = vmatpush.msra.mxu0 %v522
    %552 = vmatpush.msra.mxu0 %v521
    %553 = vmatmul.f32.gmra.mxu0 %v513
    %v554 = vpop.f32.mrf.mxu0
    %v555 = vadd.f32 0.0, %v554
    %556 = vmatmul.f32.gmra.mxu0 %v516
    %v557 = vpop.f32.mrf.mxu0
    %v558 = vadd.f32 0.0, %v557
    %559 = vdwg.mxu0
    %v560 = vperm.slane %v383, 2
    %561 = vmatpush.msra.mxu0 0.0
    %562 = vmatpush.msra.mxu0 0.0
    %563 = vmatpush.msra.mxu0 0.0
    %564 = vmatpush.msra.mxu0 0.0
    %565 = vmatpush.msra.mxu0 0.0
    %566 = vmatpush.msra.mxu0 0.0
    %567 = vmatpush.msra.mxu0 0.0
    %568 = vmatpush.msra.mxu0 0.0
    %569 = vmatpush.msra.mxu0 0.0
    %570 = vmatpush.msra.mxu0 0.0
    %571 = vmatpush.msra.mxu0 0.0
    %572 = vmatpush.msra.mxu0 0.0
    %573 = vmatpush.msra.mxu0 0.0
    %574 = vmatpush.msra.mxu0 0.0
    %575 = vmatpush.msra.mxu0 %v558
    %576 = vmatpush.msra.mxu0 %v555
    %577 = vmatmul.f32.gmra.mxu0 %v423
    %v578 = vpop.f32.mrf.mxu0
    %v579 = vadd.f32 %v560, %v578
    %580 = vmatmul.f32.gmra.mxu0 %v426
    %v581 = vpop.f32.mrf.mxu0
    %v582 = vadd.f32 %v560, %v581
    %583 = vdwg.mxu0
    %584 = vst [vmem:[#allocation23] sm:$0xff] %v579
    %585 = vst [vmem:[#allocation23 + $0x8] sm:$0xff] %v582
    // Predicated region
    $region74: #{tpu_custom_call.1} parent=1 // pred_check
      _
    $region75: #{tpu_custom_call.1} parent=1 // pred_check_branch
      %587 = sbr.rel (0) target = $region77
    $region76: #{tpu_custom_call.1} parent=1 // pred_region
      %589 = vsyncadd [#allocation4], 0
      %s590 = sshll.u32 [#allocation16], 4
      %s591 = int_to_ptr.vmem [resolvable:$true] %s590
      %s592 = sshll.u32 %s10, 4
      %s593 = int_to_ptr.hbm [resolvable:$true] %s592
      %598 = dma.vmem_to_hbm [thread:$0]  %s591, 256, %s593, [#allocation4], 128, 128, 8
    $region77: #{tpu_custom_call.1} parent=1 // pred_fallthru
      _
    // Predicated region
    $region78: #{tpu_custom_call.1} parent=1 // pred_check
      _
    $region79: #{tpu_custom_call.1} parent=1 // pred_check_branch
      %600 = sbr.rel (0) target = $region81
    $region80: #{tpu_custom_call.1} parent=1 // pred_region
      %602 = vsyncadd [#allocation18], 0
      %s603 = sshll.u32 [#allocation17], 4
      %s604 = int_to_ptr.vmem [resolvable:$true] %s603
      %s605 = sshll.u32 %s11, 4
      %s606 = int_to_ptr.hbm [resolvable:$true] %s605
      %611 = dma.vmem_to_hbm [thread:$0]  %s604, 256, %s606, [#allocation18], 128, 128, 8
    $region81: #{tpu_custom_call.1} parent=1 // pred_fallthru
      _
    // Predicated region
    $region82: #{tpu_custom_call.1} parent=1 // pred_check
      _
    $region83: #{tpu_custom_call.1} parent=1 // pred_check_branch
      %613 = sbr.rel (0) target = $region85
    $region84: #{tpu_custom_call.1} parent=1 // pred_region
      %615 = vsyncadd [#allocation18], 0
      %s616 = sshll.u32 [#allocation19], 4
      %s617 = int_to_ptr.vmem [resolvable:$true] %s616
      %s618 = sshll.u32 %s12, 4
      %s619 = int_to_ptr.hbm [resolvable:$true] %s618
      %624 = dma.vmem_to_hbm [thread:$0]  %s617, 256, %s619, [#allocation18], 128, 128, 8
    $region85: #{tpu_custom_call.1} parent=1 // pred_fallthru
      _
    // Predicated region
    $region86: #{tpu_custom_call.1} parent=1 // pred_check
      _
    $region87: #{tpu_custom_call.1} parent=1 // pred_check_branch
      %626 = sbr.rel (0) target = $region89
    $region88: #{tpu_custom_call.1} parent=1 // pred_region
      %628 = vsyncadd [#allocation21], 0
      %s629 = sshll.u32 [#allocation20], 4
      %s630 = int_to_ptr.vmem [resolvable:$true] %s629
      %s631 = sshll.u32 %s13, 4
      %s632 = int_to_ptr.hbm [resolvable:$true] %s631
      %637 = dma.vmem_to_hbm [thread:$0]  %s630, 256, %s632, [#allocation21], 128, 128, 8
    $region89: #{tpu_custom_call.1} parent=1 // pred_fallthru
      _
    // Predicated region
    $region90: #{tpu_custom_call.1} parent=1 // pred_check
      _
    $region91: #{tpu_custom_call.1} parent=1 // pred_check_branch
      %639 = sbr.rel (0) target = $region93
    $region92: #{tpu_custom_call.1} parent=1 // pred_region
      %641 = vsyncadd [#allocation21], 0
      %s642 = sshll.u32 [#allocation22], 4
      %s643 = int_to_ptr.vmem [resolvable:$true] %s642
      %s644 = sshll.u32 %s14, 4
      %s645 = int_to_ptr.hbm [resolvable:$true] %s644
      %650 = dma.vmem_to_hbm [thread:$0]  %s643, 256, %s645, [#allocation21], 128, 128, 8
    $region93: #{tpu_custom_call.1} parent=1 // pred_fallthru
      _
    // Predicated region
    $region94: #{tpu_custom_call.1} parent=1 // pred_check
      _
    $region95: #{tpu_custom_call.1} parent=1 // pred_check_branch
      %652 = sbr.rel (0) target = $region97
    $region96: #{tpu_custom_call.1} parent=1 // pred_region
      %654 = vsyncadd [#allocation24], 0
      %s655 = sshll.u32 [#allocation23], 4
      %s656 = int_to_ptr.vmem [resolvable:$true] %s655
      %s657 = sshll.u32 %s15, 4
      %s658 = int_to_ptr.hbm [resolvable:$true] %s657
      %663 = dma.vmem_to_hbm [thread:$0]  %s656, 256, %s658, [#allocation24], 128, 128, 8
    $region97: #{tpu_custom_call.1} parent=1 // pred_fallthru
      _
    // Predicated region
    $region98: #{tpu_custom_call.1} parent=1 // pred_check
      _
    $region99: #{tpu_custom_call.1} parent=1 // pred_check_branch
      %665 = sbr.rel (0) target = $region101
    $region100: #{tpu_custom_call.1} parent=1 // pred_region
      %667 = dma.done [#allocation4], 256
    $region101: #{tpu_custom_call.1} parent=1 // pred_fallthru
      _
    // Predicated region
    $region102: #{tpu_custom_call.1} parent=1 // pred_check
      _
    $region103: #{tpu_custom_call.1} parent=1 // pred_check_branch
      %669 = sbr.rel (0) target = $region105
    $region104: #{tpu_custom_call.1} parent=1 // pred_region
      %671 = dma.done [#allocation18], 256
    $region105: #{tpu_custom_call.1} parent=1 // pred_fallthru
      _
    // Predicated region
    $region106: #{tpu_custom_call.1} parent=1 // pred_check
      _
    $region107: #{tpu_custom_call.1} parent=1 // pred_check_branch
      %673 = sbr.rel (0) target = $region109
    $region108: #{tpu_custom_call.1} parent=1 // pred_region
      %675 = dma.done [#allocation18], 256
    $region109: #{tpu_custom_call.1} parent=1 // pred_fallthru
      _
    // Predicated region
    $region110: #{tpu_custom_call.1} parent=1 // pred_check
      _
    $region111: #{tpu_custom_call.1} parent=1 // pred_check_branch
      %677 = sbr.rel (0) target = $region113
    $region112: #{tpu_custom_call.1} parent=1 // pred_region
      %679 = dma.done [#allocation21], 256
    $region113: #{tpu_custom_call.1} parent=1 // pred_fallthru
      _
    // Predicated region
    $region114: #{tpu_custom_call.1} parent=1 // pred_check
      _
    $region115: #{tpu_custom_call.1} parent=1 // pred_check_branch
      %681 = sbr.rel (0) target = $region117
    $region116: #{tpu_custom_call.1} parent=1 // pred_region
      %683 = dma.done [#allocation21], 256
    $region117: #{tpu_custom_call.1} parent=1 // pred_fallthru
      _
    // Predicated region
    $region118: #{tpu_custom_call.1} parent=1 // pred_check
      _
    $region119: #{tpu_custom_call.1} parent=1 // pred_check_branch
      %685 = sbr.rel (0) target = $region121
    $region120: #{tpu_custom_call.1} parent=1 // pred_region
      %687 = dma.done [#allocation24], 256
    $region121: #{tpu_custom_call.1} parent=1 // pred_fallthru
      _
    %688 = vsyncpa [#allocation3], 1
    %689 = vsyncpa [#allocation6], 1
    %690 = vsyncpa [#allocation9], 1
    %691 = vsyncpa [#allocation12], 1
    %692 = vsyncpa [#allocation15], 1
    %693 = vsyncpa [#allocation4], 1
    %694 = vsyncpa [#allocation18], 1
    %695 = vsyncpa [#allocation21], 1
    %696 = vsyncpa [#allocation24], 1

</llo_original>
